<compile_context>
chip_gen: v6e
topology: v6e:2x2x1
jax: 0.10.0
libtpu: 0.0.40
codegen_flags: <defaults>
</compile_context>

<pallas_src>
import functools

import jax
import jax.numpy as jnp
from jax.experimental import pallas as pl
from jax.experimental.pallas import tpu as pltpu


def _rnn_cell_kernel(x_ref, h_ref, wx_ref, wh_ref, o_ref, *, compute_dtype):
    """One (tb, tn) output tile:  tanh(x @ Wx^T + h @ Wh^T)."""
    cd = compute_dtype
    x = x_ref[...].astype(cd)      # (tb, Kx)
    h = h_ref[...].astype(cd)      # (tb, Kh)
    wx = wx_ref[...].astype(cd)    # (tn, Kx)  -- PyTorch layout, no transpose in wrapper
    wh = wh_ref[...].astype(cd)    # (tn, Kh)

    # Contract dim 1 of both operands: (tb, K) . (tn, K)^T -> (tb, tn).
    dn = (((1,), (1,)), ((), ()))
    acc = jax.lax.dot_general(x, wx, dn, preferred_element_type=jnp.float32)
    acc = acc + jax.lax.dot_general(h, wh, dn, preferred_element_type=jnp.float32)
    o_ref[...] = jnp.tanh(acc).astype(o_ref.dtype)


def _pick_tile(dim, preferred, align):
    """Largest align-multiple tile <= preferred that divides dim; else full dim
    (a full-extent block is always a legal block shape)."""
    if dim <= preferred:
        return dim
    t = (preferred // align) * align
    while t >= align:
        if dim % t == 0:
            return t
        t -= align
    return dim


def rnn_cell(x, h, w_x, w_h, *, compute_dtype=jnp.bfloat16, tb_max=256, tn_max=512):
    """Pallas RNN cell.

    x:   (B, input_size)
    h:   (B, hidden_size)
    w_x: (hidden_size, input_size)   -- PyTorch nn.Linear weight layout
    w_h: (hidden_size, hidden_size)  -- PyTorch nn.Linear weight layout
    returns h_new: (B, hidden_size), dtype of x.
    """
    B, Kx = x.shape
    H, Kh = w_h.shape
    assert w_x.shape == (H, Kx), (w_x.shape, (H, Kx))
    assert h.shape == (B, Kh) and Kh == H, (h.shape, (B, H))

    cd = compute_dtype if compute_dtype is not None else x.dtype

    tb = _pick_tile(B, tb_max, 8)      # sublane-aligned batch tile
    tn = _pick_tile(H, tn_max, 128)    # lane-dense hidden tile
    grid = (B // tb, H // tn)

    kernel = functools.partial(_rnn_cell_kernel, compute_dtype=cd)

    itemsize = jnp.dtype(x.dtype).itemsize
    cost = pl.CostEstimate(
        flops=2 * B * H * (Kx + Kh),
        transcendentals=B * H,
        bytes_accessed=(x.size + h.size + B * H) * itemsize
        + w_x.size * jnp.dtype(w_x.dtype).itemsize
        + w_h.size * jnp.dtype(w_h.dtype).itemsize,
    )

    return pl.pallas_call(
        kernel,
        out_shape=jax.ShapeDtypeStruct((B, H), x.dtype),
        grid_spec=pltpu.PrefetchScalarGridSpec(
            num_scalar_prefetch=0,
            grid=grid,
            in_specs=[
                pl.BlockSpec((tb, Kx), lambda i, j: (i, 0)),   # x rows
                pl.BlockSpec((tb, Kh), lambda i, j: (i, 0)),   # h rows
                pl.BlockSpec((tn, Kx), lambda i, j: (j, 0)),   # W_x row-block (PyTorch layout)
                pl.BlockSpec((tn, Kh), lambda i, j: (j, 0)),   # W_h row-block (PyTorch layout)
            ],
            out_specs=pl.BlockSpec((tb, tn), lambda i, j: (i, j)),
        ),
        compiler_params=pltpu.CompilerParams(
            dimension_semantics=("parallel", "parallel"),
            vmem_limit_bytes=32 * 1024 * 1024,  # valid on v5e/v6e/v7x
        ),
        cost_estimate=cost,
    )(x, h, w_x, w_h)


def rnn_cell_ref(x, h, w_x, w_h, *, compute_dtype=jnp.float32):
    """Pure-JAX reference matching PyTorch semantics; optional operand rounding
    to `compute_dtype` to mirror the kernel's bf16 MXU operands exactly."""
    cd = compute_dtype
    hi = jax.lax.Precision.HIGHEST
    xw = jnp.dot(x.astype(cd), w_x.astype(cd).T,
                 preferred_element_type=jnp.float32, precision=hi)
    hw = jnp.dot(h.astype(cd), w_h.astype(cd).T,
                 preferred_element_type=jnp.float32, precision=hi)
    return jnp.tanh(xw + hw).astype(x.dtype)


if __name__ == "__main__":
    # Small, TPU-friendly shapes consistent with the module (lane-dense hidden).
    batch = 8
    input_size = 128
    hidden_size = 256

    key = jax.random.PRNGKey(0)
    k_x, k_h, k_wx, k_wh = jax.random.split(key, 4)

    x = jax.random.normal(k_x, (batch, input_size), dtype=jnp.float32)
    h = jax.random.normal(k_h, (batch, hidden_size), dtype=jnp.float32)

    # nn.Linear default init: U(-1/sqrt(fan_in), 1/sqrt(fan_in)), PyTorch layout.
    bound_x = 1.0 / (input_size ** 0.5)
    bound_h = 1.0 / (hidden_size ** 0.5)
    w_x = jax.random.uniform(k_wx, (hidden_size, input_size), jnp.float32,
                             -bound_x, bound_x)
    w_h = jax.random.uniform(k_wh, (hidden_size, hidden_size), jnp.float32,
                             -bound_h, bound_h)

    # tn_max=128 forces a (1, 2) grid so the multi-tile path is exercised even
    # at these small demo shapes.
    out = rnn_cell(x, h, w_x, w_h, tn_max=128)
    out = jax.block_until_ready(out)
    assert out.shape == (batch, hidden_size)
    assert out.dtype == x.dtype

    # Matched reference (same bf16 operand rounding, f32 accumulation).
    ref_bf16 = rnn_cell_ref(x, h, w_x, w_h, compute_dtype=jnp.bfloat16)
    assert jnp.allclose(out, ref_bf16, atol=1e-3, rtol=0.0), \
        "mismatch vs matched (bf16-operand) reference"

    # Loose sanity check against the exact f32 PyTorch math.
    ref_f32 = rnn_cell_ref(x, h, w_x, w_h, compute_dtype=jnp.float32)
    assert jnp.allclose(out, ref_f32, atol=3e-2, rtol=0.0), \
        "mismatch vs f32 reference"

    print("KERNEL_OK")
</pallas_src>

<mosaic_0001>
module attributes {stable_mosaic.version = 11 : i64} {
  func.func @_rnn_cell_kernel(%arg0: i32, %arg1: i32, %arg2: memref<8x128xf32, #tpu.memory_space<vmem>>, %arg3: memref<8x256xf32, #tpu.memory_space<vmem>>, %arg4: memref<128x128xf32, #tpu.memory_space<vmem>>, %arg5: memref<128x256xf32, #tpu.memory_space<vmem>>, %arg6: memref<8x128xf32, #tpu.memory_space<vmem>>) attributes {dimension_semantics = [#tpu.dimension_semantics<parallel>, #tpu.dimension_semantics<parallel>], iteration_bounds = array<i64: 1, 2>, scalar_prefetch = 0 : i64, scratch_operands = 0 : i64, tpu.core_type = #tpu.core_type<tc>, window_params = [{transform_indices = @transform_0, window_bounds = array<i64: 8, 128>}, {transform_indices = @transform_1, window_bounds = array<i64: 8, 256>}, {transform_indices = @transform_2, window_bounds = array<i64: 128, 128>}, {transform_indices = @transform_3, window_bounds = array<i64: 128, 256>}, {transform_indices = @transform_4, window_bounds = array<i64: 8, 128>}]} {
    %c0 = arith.constant 0 : index
    %c0_0 = arith.constant 0 : index
    %0 = vector.load %arg2[%c0, %c0_0] : memref<8x128xf32, #tpu.memory_space<vmem>>, vector<8x128xf32>
    %1 = arith.truncf %0 : vector<8x128xf32> to vector<8x128xbf16>
    %c0_1 = arith.constant 0 : index
    %c0_2 = arith.constant 0 : index
    %2 = vector.load %arg3[%c0_1, %c0_2] : memref<8x256xf32, #tpu.memory_space<vmem>>, vector<8x256xf32>
    %3 = arith.truncf %2 : vector<8x256xf32> to vector<8x256xbf16>
    %c0_3 = arith.constant 0 : index
    %c0_4 = arith.constant 0 : index
    %4 = vector.load %arg4[%c0_3, %c0_4] : memref<128x128xf32, #tpu.memory_space<vmem>>, vector<128x128xf32>
    %5 = arith.truncf %4 : vector<128x128xf32> to vector<128x128xbf16>
    %c0_5 = arith.constant 0 : index
    %c0_6 = arith.constant 0 : index
    %6 = vector.load %arg5[%c0_5, %c0_6] : memref<128x256xf32, #tpu.memory_space<vmem>>, vector<128x256xf32>
    %7 = arith.truncf %6 : vector<128x256xf32> to vector<128x256xbf16>
    %cst = arith.constant dense<0.000000e+00> : vector<8x128xf32>
    %8 = tpu.matmul %1, %5, %cst {dimension_numbers = #tpu.dot_dimension_numbers<[1], [1], [0], [0], [0, 0, 1, 0], [], []>} : vector<8x128xbf16>, vector<128x128xbf16>, vector<8x128xf32> -> vector<8x128xf32>
    %cst_7 = arith.constant dense<0.000000e+00> : vector<8x128xf32>
    %9 = tpu.matmul %3, %7, %cst_7 {dimension_numbers = #tpu.dot_dimension_numbers<[1], [1], [0], [0], [0, 0, 1, 0], [], []>} : vector<8x256xbf16>, vector<128x256xbf16>, vector<8x128xf32> -> vector<8x128xf32>
    %10 = arith.addf %8, %9 : vector<8x128xf32>
    %11 = math.tanh %10 : vector<8x128xf32>
    %c0_8 = arith.constant 0 : index
    %c0_9 = arith.constant 0 : index
    %12 = vector.load %arg6[%c0_8, %c0_9] : memref<8x128xf32, #tpu.memory_space<vmem>>, vector<8x128xf32>
    tpu.vector_store %arg6[%c0_8, %c0_9], %11 {strides = array<i32>} : memref<8x128xf32, #tpu.memory_space<vmem>>, vector<8x128xf32>,
    return
  }
  func.func @transform_0(%arg0: i32, %arg1: i32) -> (i32, i32) {
    %c0_i32 = arith.constant 0 : i32
    %c0_i32_0 = arith.constant 0 : i32
    return %arg0, %c0_i32 : i32, i32
  }
  func.func @transform_1(%arg0: i32, %arg1: i32) -> (i32, i32) {
    %c0_i32 = arith.constant 0 : i32
    %c0_i32_0 = arith.constant 0 : i32
    return %arg0, %c0_i32 : i32, i32
  }
  func.func @transform_2(%arg0: i32, %arg1: i32) -> (i32, i32) {
    %c0_i32 = arith.constant 0 : i32
    %c0_i32_0 = arith.constant 0 : i32
    return %arg1, %c0_i32 : i32, i32
  }
  func.func @transform_3(%arg0: i32, %arg1: i32) -> (i32, i32) {
    %c0_i32 = arith.constant 0 : i32
    %c0_i32_0 = arith.constant 0 : i32
    return %arg1, %c0_i32 : i32, i32
  }
  func.func @transform_4(%arg0: i32, %arg1: i32) -> (i32, i32) {
    %c0_i32 = arith.constant 0 : i32
    return %arg0, %arg1 : i32, i32
  }
}

</mosaic_0001>

<llo_original>
// kernel: tpu_custom_call.1
$region0: #{tpu_custom_call.1}
  #allocation0 [shape = 'u32[]', space=smem, size = 0x4, offset = 0x4, fixed_abs, tag = 'smem constant byte address 0x4 - core index']
  #allocation1 [shape = 'u32[144,128]{1,0:T(1,128)}', space=vmem, size = 0x12000, scoped, tag = 'internal scratch']
  %s0 = inlined_call_operand.hbm [shape: f32[8,128], index: 0, kind: input, shape index: {}]
  %s1 = inlined_call_operand.hbm [shape: f32[8,256], index: 1, kind: input, shape index: {}]
  %s2 = inlined_call_operand.hbm [shape: f32[256,128], index: 2, kind: input, shape index: {}]
  %s3 = inlined_call_operand.hbm [shape: f32[256,256], index: 3, kind: input, shape index: {}]
  %s4 = inlined_call_operand.hbm [shape: f32[8,256], index: 4, kind: output, shape index: {}]
  %s5 = sld [smem:[#allocation0]]
  $region65: #{tpu_custom_call.1} parent=0
    _
  %s7 = ssub.s32 1, %s5
  %s8 = scalar_select 0, %s7, %s5
  $region1: #{tpu_custom_call.1} parent=0
    #allocation2 [shape = 'u8[4096]{0}', space=vmem, size = 0x1000, scoped, tag = 'input window, operand 0, single buffered']
    #allocation3 [shape = 's32[2]{0}', space=sflag, size = 0x8, scoped, tag = 'scoped memory for tpu_custom_call.1']
    #allocation4 [shape = 's32[2]{0}', space=sflag, size = 0x8, scoped, tag = 'scoped memory for tpu_custom_call.1']
    #allocation5 [shape = 'u8[8192]{0}', space=vmem, size = 0x2000, scoped, tag = 'input window, operand 1, single buffered']
    #allocation6 [shape = 's32[1]{0}', space=sflag, size = 0x4, scoped, tag = 'scoped memory for tpu_custom_call.1']
    #allocation7 [shape = 'u8[131072]{0}', space=vmem, size = 0x20000, scoped, tag = 'input window, operand 2']
    #allocation8 [shape = 'u8[262144]{0}', space=vmem, size = 0x40000, scoped, tag = 'input window, operand 3']
    #allocation9 [shape = 'u8[8192]{0}', space=vmem, size = 0x2000, scoped, tag = 'output window, operand 0']
    %9 = vsyncpa [#allocation3], 0
    %10 = vsyncpa [#allocation6], 0
    %11 = vsyncpa [#allocation4], 0
    %s12 = scalar_lea.sflag [#allocation4], 1
    %13 = vsyncpa %s12, 0
    loop: start=0, step=1, limit=4
    $region2: #{tpu_custom_call.1} parent=1 // loop_pre_header
      _
    $region3: #{tpu_custom_call.1} parent=1 // loop_header
      %s15 = sphi 0, %s19
      %p16 = scmp.ge.s32.totalorder %s15, 4
      %s22 = sphi 0, %s34
      %s23 = sphi 0, %s30
      %s24 = sphi 0, %s22
      %s25 = sphi 0, %s23
      %s26 = sphi 0, %s24
      %s27 = sphi 0, %s25
      %s37 = sphi 0, %s39
      %s40 = sphi 0, %s37
      %s41 = sphi 0, %s40
      %s57 = sphi 0, %s41
      %s63 = sphi 0, %s65
      %s66 = sphi 0, %s63
      %s67 = sphi 0, %s66
      %s83 = sphi 0, %s67
      %s89 = sphi 0, %s91
      %s92 = sphi 0, %s89
      %s93 = sphi 0, %s92
      %s109 = sphi 0, %s93
      %s115 = sphi 0, %s117
      %s118 = sphi 0, %s115
      %s119 = sphi 0, %s118
      %s135 = sphi 0, %s119
      %s143 = sphi 0, %s145
      %s146 = sphi 0, %s143
      %s147 = sphi 0, %s146
      %s163 = sphi 0, %s147
    $region4: #{tpu_custom_call.1} parent=1 // loop_header_branch
      %18 = sbr.rel (%p16) target = $region8
    $region5: #{tpu_custom_call.1} parent=1 // loop_body
      %s20 = ssub.s32 %s15, 1
      %s21 = ssub.s32 %s15, 2
      %s28 = sadd.s32 1, %s23
      %p29 = scmp.ge.s32.totalorder %s28, 2
      %s30 = scalar_select %p29, 0, %s28
      %s31 = sadd.s32 1, %s22
      %s32 = scalar_select %p29, %s31, %s22
      %p33 = scmp.ge.s32.totalorder %s32, 1
      %s34 = scalar_select %p33, 0, %s32
      %s35 = ssub.s32 %s22, %s34
      %p36 = scmp.eq.s32.totalorder %s35, 0
      %s38 = sadd.s32 %s37, 1
      %s39 = scalar_select %p36, %s37, %s38
      %p42 = pneg %p36
      %p43 = scmp.eq.s32.totalorder %s15, 1
      %p44 = por %p42, %p43
      %p45 = scmp.ne.s32.totalorder %s37, %s40
      %p46 = scmp.eq.s32.totalorder %s15, 0
      %p47 = por %p45, %p46
      %p48 = scmp.ne.s32.totalorder %s37, %s40
      %p49 = scmp.eq.s32.totalorder %s20, 1
      %p50 = por %p48, %p49
      %p51 = scmp.ne.s32.totalorder %s40, %s41
      %p52 = scmp.eq.s32.totalorder %s20, 0
      %p53 = por %p51, %p52
      %p54 = scmp.ne.s32.totalorder %s40, %s41
      %p55 = scmp.eq.s32.totalorder %s21, 1
      %p56 = por %p54, %p55
      %p58 = scmp.ne.s32.totalorder %s41, %s57
      %p59 = scmp.eq.s32.totalorder %s21, 0
      %p60 = por %p58, %p59
      %s61 = ssub.s32 %s22, %s34
      %p62 = scmp.eq.s32.totalorder %s61, 0
      %s64 = sadd.s32 %s63, 1
      %s65 = scalar_select %p62, %s63, %s64
      %p68 = pneg %p62
      %p69 = scmp.eq.s32.totalorder %s15, 1
      %p70 = por %p68, %p69
      %p71 = scmp.ne.s32.totalorder %s63, %s66
      %p72 = scmp.eq.s32.totalorder %s15, 0
      %p73 = por %p71, %p72
      %p74 = scmp.ne.s32.totalorder %s63, %s66
      %p75 = scmp.eq.s32.totalorder %s20, 1
      %p76 = por %p74, %p75
      %p77 = scmp.ne.s32.totalorder %s66, %s67
      %p78 = scmp.eq.s32.totalorder %s20, 0
      %p79 = por %p77, %p78
      %p80 = scmp.ne.s32.totalorder %s66, %s67
      %p81 = scmp.eq.s32.totalorder %s21, 1
      %p82 = por %p80, %p81
      %p84 = scmp.ne.s32.totalorder %s67, %s83
      %p85 = scmp.eq.s32.totalorder %s21, 0
      %p86 = por %p84, %p85
      %s87 = ssub.s32 %s23, %s30
      %p88 = scmp.eq.s32.totalorder %s87, 0
      %s90 = sadd.s32 %s89, 1
      %s91 = scalar_select %p88, %s89, %s90
      %p94 = pneg %p88
      %p95 = scmp.eq.s32.totalorder %s15, 1
      %p96 = por %p94, %p95
      %p97 = scmp.ne.s32.totalorder %s89, %s92
      %p98 = scmp.eq.s32.totalorder %s15, 0
      %p99 = por %p97, %p98
      %p100 = scmp.ne.s32.totalorder %s89, %s92
      %p101 = scmp.eq.s32.totalorder %s20, 1
      %p102 = por %p100, %p101
      %p103 = scmp.ne.s32.totalorder %s92, %s93
      %p104 = scmp.eq.s32.totalorder %s20, 0
      %p105 = por %p103, %p104
      %p106 = scmp.ne.s32.totalorder %s92, %s93
      %p107 = scmp.eq.s32.totalorder %s21, 1
      %p108 = por %p106, %p107
      %p110 = scmp.ne.s32.totalorder %s93, %s109
      %p111 = scmp.eq.s32.totalorder %s21, 0
      %p112 = por %p110, %p111
      %s113 = ssub.s32 %s23, %s30
      %p114 = scmp.eq.s32.totalorder %s113, 0
      %s116 = sadd.s32 %s115, 1
      %s117 = scalar_select %p114, %s115, %s116
      %p120 = pneg %p114
      %p121 = scmp.eq.s32.totalorder %s15, 1
      %p122 = por %p120, %p121
      %p123 = scmp.ne.s32.totalorder %s115, %s118
      %p124 = scmp.eq.s32.totalorder %s15, 0
      %p125 = por %p123, %p124
      %p126 = scmp.ne.s32.totalorder %s115, %s118
      %p127 = scmp.eq.s32.totalorder %s20, 1
      %p128 = por %p126, %p127
      %p129 = scmp.ne.s32.totalorder %s118, %s119
      %p130 = scmp.eq.s32.totalorder %s20, 0
      %p131 = por %p129, %p130
      %p132 = scmp.ne.s32.totalorder %s118, %s119
      %p133 = scmp.eq.s32.totalorder %s21, 1
      %p134 = por %p132, %p133
      %p136 = scmp.ne.s32.totalorder %s119, %s135
      %p137 = scmp.eq.s32.totalorder %s21, 0
      %p138 = por %p136, %p137
      %s139 = ssub.s32 %s22, %s34
      %s140 = ssub.s32 %s23, %s30
      %s141 = sor.u32 %s139, %s140
      %p142 = scmp.eq.s32.totalorder %s141, 0
      %s144 = sadd.s32 %s143, 1
      %s145 = scalar_select %p142, %s143, %s144
      %p148 = pneg %p142
      %p149 = scmp.eq.s32.totalorder %s15, 1
      %p150 = por %p148, %p149
      %p151 = scmp.ne.s32.totalorder %s143, %s146
      %p152 = scmp.eq.s32.totalorder %s15, 0
      %p153 = por %p151, %p152
      %p154 = scmp.ne.s32.totalorder %s143, %s146
      %p155 = scmp.eq.s32.totalorder %s20, 1
      %p156 = por %p154, %p155
      %p157 = scmp.ne.s32.totalorder %s146, %s147
      %p158 = scmp.eq.s32.totalorder %s20, 0
      %p159 = por %p157, %p158
      %p160 = scmp.ne.s32.totalorder %s146, %s147
      %p161 = scmp.eq.s32.totalorder %s21, 1
      %p162 = por %p160, %p161
      %p164 = scmp.ne.s32.totalorder %s147, %s163
      %p165 = scmp.eq.s32.totalorder %s21, 0
      %p166 = por %p164, %p165
      %p167 = scmp.le.s32.totalorder 1, %s15
      %p168 = scmp.lt.s32.totalorder %s15, 3
      %p169 = pnand %p167, %p168
      %p170 = pneg %p169
      // Predicated region
      $region9: #{tpu_custom_call.1} parent=5 // pred_check
        _
      $region10: #{tpu_custom_call.1} parent=5 // pred_check_branch
        %172 = sbr.rel (%p169) target = $region12
      $region11: #{tpu_custom_call.1} parent=5 // pred_region
        %s173 = ssub.s32 %s15, 1
        // Predicated region
        $region13: #{tpu_custom_call.1} parent=11 // pred_check
          %p174 = pneg %p53
        $region14: #{tpu_custom_call.1} parent=11 // pred_check_branch
          %176 = sbr.rel (%p174) target = $region16
        $region15: #{tpu_custom_call.1} parent=11 // pred_region
          %s178 = ssub.s32 128, 128
          %179 = vsyncadd [#allocation3], %s178
          %s180 = smul.addr %s24, 128
          %s181 = scalar_lea.hbm %s0, %s180
          %s183 = sshll.u32 [#allocation2], 4
          %s184 = int_to_ptr.vmem [resolvable:$true] %s183
          %186 = dma.hbm_to_vmem [thread:$0]  %s181, 128, %s184, [#allocation3]
        $region16: #{tpu_custom_call.1} parent=11 // pred_fallthru
          _
        // Predicated region
        $region17: #{tpu_custom_call.1} parent=11 // pred_check
          %p187 = pneg %p79
        $region18: #{tpu_custom_call.1} parent=11 // pred_check_branch
          %189 = sbr.rel (%p187) target = $region20
        $region19: #{tpu_custom_call.1} parent=11 // pred_region
          %s191 = ssub.s32 256, 256
          %192 = vsyncadd [#allocation6], %s191
          %s193 = smul.addr %s24, 2
          %s194 = smul.addr %s193, 128
          %s195 = scalar_lea.hbm %s1, %s194
          %s197 = sshll.u32 [#allocation5], 4
          %s198 = int_to_ptr.vmem [resolvable:$true] %s197
          %200 = dma.hbm_to_vmem [thread:$0]  %s195, 256, %s198, [#allocation6]
        $region20: #{tpu_custom_call.1} parent=11 // pred_fallthru
          _
      $region12: #{tpu_custom_call.1} parent=5 // pred_fallthru
        _
      %p201 = scmp.lt.s32.totalorder %s15, 2
      // Predicated region
      $region21: #{tpu_custom_call.1} parent=5 // pred_check
        %p202 = pneg %p201
      $region22: #{tpu_custom_call.1} parent=5 // pred_check_branch
        %204 = sbr.rel (%p202) target = $region24
      $region23: #{tpu_custom_call.1} parent=5 // pred_region
        // Predicated region
        $region25: #{tpu_custom_call.1} parent=23 // pred_check
          %p205 = pneg %p99
        $region26: #{tpu_custom_call.1} parent=23 // pred_check_branch
          %207 = sbr.rel (%p205) target = $region28
        $region27: #{tpu_custom_call.1} parent=23 // pred_region
          %s208 = sand.u32 %s15, 1
          %s209 = scalar_lea.sflag [#allocation3], %s208
          %s210 = sand.u32 %s89, 1
          %s211 = smul.addr %s210, 128
          %s212 = scalar_lea.vmem [#allocation7], %s211
          %s213 = smul.u32 16, %s23
          %s215 = ssub.s32 2048, 2048
          %216 = vsyncadd %s209, %s215
          %s217 = smul.addr %s213, 128
          %s218 = scalar_lea.hbm %s2, %s217
          %s219 = sshll.u32 %s212, 4
          %s220 = int_to_ptr.vmem [resolvable:$true] %s219
          %225 = dma.hbm_to_vmem [thread:$0]  %s218, 2048, %s220, %s209, 128, 128, 8
        $region28: #{tpu_custom_call.1} parent=23 // pred_fallthru
          _
        // Predicated region
        $region29: #{tpu_custom_call.1} parent=23 // pred_check
          %p226 = pneg %p125
        $region30: #{tpu_custom_call.1} parent=23 // pred_check_branch
          %228 = sbr.rel (%p226) target = $region32
        $region31: #{tpu_custom_call.1} parent=23 // pred_region
          %s229 = sand.u32 %s15, 1
          %s230 = scalar_lea.sflag [#allocation3], %s229
          %s231 = sand.u32 %s115, 1
          %s232 = smul.addr %s231, 256
          %s233 = scalar_lea.vmem [#allocation8], %s232
          %s234 = smul.u32 16, %s23
          %s236 = ssub.s32 4096, 4096
          %237 = vsyncadd %s230, %s236
          %s238 = smul.addr %s234, 2
          %s239 = smul.addr %s238, 128
          %s240 = scalar_lea.hbm %s3, %s239
          %s241 = sshll.u32 %s233, 4
          %s242 = int_to_ptr.vmem [resolvable:$true] %s241
          %247 = dma.hbm_to_vmem [thread:$0]  %s240, 4096, %s242, %s230, 256, 256, 16
        $region32: #{tpu_custom_call.1} parent=23 // pred_fallthru
          _
      $region24: #{tpu_custom_call.1} parent=5 // pred_fallthru
        _
      %p248 = scmp.le.s32.totalorder 1, %s15
      %p249 = scmp.lt.s32.totalorder %s15, 3
      %p250 = pnand %p248, %p249
      %p251 = pneg %p250
      // Predicated region
      $region33: #{tpu_custom_call.1} parent=5 // pred_check
        _
      $region34: #{tpu_custom_call.1} parent=5 // pred_check_branch
        %253 = sbr.rel (%p250) target = $region36
      $region35: #{tpu_custom_call.1} parent=5 // pred_region
        %s254 = ssub.s32 %s15, 1
        // Predicated region
        $region37: #{tpu_custom_call.1} parent=35 // pred_check
          %p255 = pneg %p53
        $region38: #{tpu_custom_call.1} parent=35 // pred_check_branch
          %257 = sbr.rel (%p255) target = $region40
        $region39: #{tpu_custom_call.1} parent=35 // pred_region
          %258 = dma.done [#allocation3], 128
        $region40: #{tpu_custom_call.1} parent=35 // pred_fallthru
          _
        // Predicated region
        $region41: #{tpu_custom_call.1} parent=35 // pred_check
          %p259 = pneg %p79
        $region42: #{tpu_custom_call.1} parent=35 // pred_check_branch
          %261 = sbr.rel (%p259) target = $region44
        $region43: #{tpu_custom_call.1} parent=35 // pred_region
          %262 = dma.done [#allocation6], 256
        $region44: #{tpu_custom_call.1} parent=35 // pred_fallthru
          _
        %s263 = sand.u32 %s20, 1
        %s264 = scalar_lea.sflag [#allocation3], %s263
        %s265 = sand.u32 %s92, 1
        %s266 = smul.addr %s265, 128
        %s267 = scalar_lea.vmem [#allocation7], %s266
        // Predicated region
        $region45: #{tpu_custom_call.1} parent=35 // pred_check
          %p268 = pneg %p105
        $region46: #{tpu_custom_call.1} parent=35 // pred_check_branch
          %270 = sbr.rel (%p268) target = $region48
        $region47: #{tpu_custom_call.1} parent=35 // pred_region
          %271 = dma.done %s264, 2048
        $region48: #{tpu_custom_call.1} parent=35 // pred_fallthru
          _
        %s272 = sand.u32 %s20, 1
        %s273 = scalar_lea.sflag [#allocation3], %s272
        %s274 = sand.u32 %s118, 1
        %s275 = smul.addr %s274, 256
        %s276 = scalar_lea.vmem [#allocation8], %s275
        // Predicated region
        $region49: #{tpu_custom_call.1} parent=35 // pred_check
          %p277 = pneg %p131
        $region50: #{tpu_custom_call.1} parent=35 // pred_check_branch
          %279 = sbr.rel (%p277) target = $region52
        $region51: #{tpu_custom_call.1} parent=35 // pred_region
          %280 = dma.done %s273, 4096
        $region52: #{tpu_custom_call.1} parent=35 // pred_fallthru
          _
        %p281 = pneg %p53
        %p282 = pneg %p50
        %p283 = pneg %p79
        %p284 = pneg %p76
        %s285 = sand.u32 %s20, 1
        %s286 = scalar_lea.sflag [#allocation3], %s285
        %s287 = sand.u32 %s92, 1
        %s288 = smul.addr %s287, 128
        %s289 = scalar_lea.vmem [#allocation7], %s288
        %p290 = pneg %p105
        %p291 = pneg %p102
        %s292 = sand.u32 %s20, 1
        %s293 = scalar_lea.sflag [#allocation3], %s292
        %s294 = sand.u32 %s118, 1
        %s295 = smul.addr %s294, 256
        %s296 = scalar_lea.vmem [#allocation8], %s295
        %p297 = pneg %p131
        %p298 = pneg %p128
        %p299 = pneg %p159
        %p300 = pneg %p156
        %s301 = sand.u32 %s146, 1
        %s302 = scalar_lea.sflag [#allocation4], %s301
        %s303 = sand.u32 %s146, 1
        %s304 = smul.addr %s303, 8
        %s305 = scalar_lea.vmem [#allocation9], %s304
        %s306 = smul.u32 16, %s25
        %s307 = smul.u32 16, %s25
        %v309 = vld [vmem:[#allocation2] sm:$0xff]
        %v310 = vpack.c.bf16 %v309, %v309
        %v311 = vld [vmem:[#allocation5] sm:$0xff]
        %v312 = vld [vmem:[#allocation5 + $0x8] sm:$0xff]
        %v313 = vpack.c.bf16 %v311, %v311
        %v314 = vpack.c.bf16 %v312, %v312
        %v315 = vld [vmem:[%s267] sm:$0xff]
        %v316 = vld [vmem:[%s267 + $0x8] sm:$0xff]
        %v317 = vld [vmem:[%s267 + $0x10] sm:$0xff]
        %v318 = vld [vmem:[%s267 + $0x18] sm:$0xff]
        %v319 = vld [vmem:[%s267 + $0x20] sm:$0xff]
        %v320 = vld [vmem:[%s267 + $0x28] sm:$0xff]
        %v321 = vld [vmem:[%s267 + $0x30] sm:$0xff]
        %v322 = vld [vmem:[%s267 + $0x38] sm:$0xff]
        %v323 = vld [vmem:[%s267 + $0x40] sm:$0xff]
        %v324 = vld [vmem:[%s267 + $0x48] sm:$0xff]
        %v325 = vld [vmem:[%s267 + $0x50] sm:$0xff]
        %v326 = vld [vmem:[%s267 + $0x58] sm:$0xff]
        %v327 = vld [vmem:[%s267 + $0x60] sm:$0xff]
        %v328 = vld [vmem:[%s267 + $0x68] sm:$0xff]
        %v329 = vld [vmem:[%s267 + $0x70] sm:$0xff]
        %v330 = vld [vmem:[%s267 + $0x78] sm:$0xff]
        %v331 = vpack.c.bf16 %v316, %v315
        %v332 = vpack.c.bf16 %v318, %v317
        %v333 = vpack.c.bf16 %v320, %v319
        %v334 = vpack.c.bf16 %v322, %v321
        %v335 = vpack.c.bf16 %v324, %v323
        %v336 = vpack.c.bf16 %v326, %v325
        %v337 = vpack.c.bf16 %v328, %v327
        %v338 = vpack.c.bf16 %v330, %v329
        %v339 = vld [vmem:[%s276] sm:$0xff]
        %v340 = vld [vmem:[%s276 + $0x8] sm:$0xff]
        %v341 = vld [vmem:[%s276 + $0x10] sm:$0xff]
        %v342 = vld [vmem:[%s276 + $0x18] sm:$0xff]
        %v343 = vld [vmem:[%s276 + $0x20] sm:$0xff]
        %v344 = vld [vmem:[%s276 + $0x28] sm:$0xff]
        %v345 = vld [vmem:[%s276 + $0x30] sm:$0xff]
        %v346 = vld [vmem:[%s276 + $0x38] sm:$0xff]
        %v347 = vld [vmem:[%s276 + $0x40] sm:$0xff]
        %v348 = vld [vmem:[%s276 + $0x48] sm:$0xff]
        %v349 = vld [vmem:[%s276 + $0x50] sm:$0xff]
        %v350 = vld [vmem:[%s276 + $0x58] sm:$0xff]
        %v351 = vld [vmem:[%s276 + $0x60] sm:$0xff]
        %v352 = vld [vmem:[%s276 + $0x68] sm:$0xff]
        %v353 = vld [vmem:[%s276 + $0x70] sm:$0xff]
        %v354 = vld [vmem:[%s276 + $0x78] sm:$0xff]
        %v355 = vld [vmem:[%s276 + $0x80] sm:$0xff]
        %v356 = vld [vmem:[%s276 + $0x88] sm:$0xff]
        %v357 = vld [vmem:[%s276 + $0x90] sm:$0xff]
        %v358 = vld [vmem:[%s276 + $0x98] sm:$0xff]
        %v359 = vld [vmem:[%s276 + $0xa0] sm:$0xff]
        %v360 = vld [vmem:[%s276 + $0xa8] sm:$0xff]
        %v361 = vld [vmem:[%s276 + $0xb0] sm:$0xff]
        %v362 = vld [vmem:[%s276 + $0xb8] sm:$0xff]
        %v363 = vld [vmem:[%s276 + $0xc0] sm:$0xff]
        %v364 = vld [vmem:[%s276 + $0xc8] sm:$0xff]
        %v365 = vld [vmem:[%s276 + $0xd0] sm:$0xff]
        %v366 = vld [vmem:[%s276 + $0xd8] sm:$0xff]
        %v367 = vld [vmem:[%s276 + $0xe0] sm:$0xff]
        %v368 = vld [vmem:[%s276 + $0xe8] sm:$0xff]
        %v369 = vld [vmem:[%s276 + $0xf0] sm:$0xff]
        %v370 = vld [vmem:[%s276 + $0xf8] sm:$0xff]
        %v371 = vpack.c.bf16 %v341, %v339
        %v372 = vpack.c.bf16 %v342, %v340
        %v373 = vpack.c.bf16 %v345, %v343
        %v374 = vpack.c.bf16 %v346, %v344
        %v375 = vpack.c.bf16 %v349, %v347
        %v376 = vpack.c.bf16 %v350, %v348
        %v377 = vpack.c.bf16 %v353, %v351
        %v378 = vpack.c.bf16 %v354, %v352
        %v379 = vpack.c.bf16 %v357, %v355
        %v380 = vpack.c.bf16 %v358, %v356
        %v381 = vpack.c.bf16 %v361, %v359
        %v382 = vpack.c.bf16 %v362, %v360
        %v383 = vpack.c.bf16 %v365, %v363
        %v384 = vpack.c.bf16 %v366, %v364
        %v385 = vpack.c.bf16 %v369, %v367
        %v386 = vpack.c.bf16 %v370, %v368
        %387 = vmatprep.subr.bf16.mxu0 %v386
        %388 = vmatpush1.bf16.xpose.msra.mxu0 %v385
        %389 = vmatprep.subr.bf16.mxu0 %v384
        %390 = vmatpush1.bf16.xpose.msra.mxu0 %v383
        %391 = vmatprep.subr.bf16.mxu0 %v382
        %392 = vmatpush1.bf16.xpose.msra.mxu0 %v381
        %393 = vmatprep.subr.bf16.mxu0 %v380
        %394 = vmatpush1.bf16.xpose.msra.mxu0 %v379
        %395 = vmatprep.subr.bf16.mxu0 %v378
        %396 = vmatpush1.bf16.xpose.msra.mxu0 %v377
        %397 = vmatprep.subr.bf16.mxu0 %v376
        %398 = vmatpush1.bf16.xpose.msra.mxu0 %v375
        %399 = vmatprep.subr.bf16.mxu0 %v374
        %400 = vmatpush1.bf16.xpose.msra.mxu0 %v373
        %401 = vmatprep.subr.bf16.mxu0 %v372
        %402 = vmatpush1.bf16.xpose.msra.mxu0 %v371
        %403 = vmatprep.subr.bf16.mxu0 0
        %404 = vmatpush2.bf16.xpose.msra.mxu0 0
        %405 = vmatprep.subr.bf16.mxu0 0
        %406 = vmatpush2.bf16.xpose.msra.mxu0 0
        %407 = vmatprep.subr.bf16.mxu0 0
        %408 = vmatpush2.bf16.xpose.msra.mxu0 0
        %409 = vmatprep.subr.bf16.mxu0 0
        %410 = vmatpush2.bf16.xpose.msra.mxu0 0
        %411 = vmatprep.subr.bf16.mxu0 0
        %412 = vmatpush2.bf16.xpose.msra.mxu0 0
        %413 = vmatprep.subr.bf16.mxu0 0
        %414 = vmatpush2.bf16.xpose.msra.mxu0 0
        %415 = vmatprep.subr.bf16.mxu0 0
        %416 = vmatpush2.bf16.xpose.msra.mxu0 0
        %417 = vmatprep.subr.bf16.mxu0 0
        %418 = vmatpush2.bf16.xpose.msra.mxu0 0
        %419 = vmatprep.mubr.bf16.mxu0 %v314
        %420 = vmatmul.mubr.bf16.gmra.mxu0 %v313
        %v421 = vpop.f32.mrf.mxu0
        %v422 = vadd.f32 0.0, %v421
        %v423 = vpop.f32.mrf.mxu0
        %v424 = vpop.f32.mrf.mxu0
        %v425 = vpop.f32.mrf.mxu0
        %426 = vdwg.mxu0
        %427 = vmatprep.subr.bf16.mxu0 0
        %428 = vmatpush1.bf16.xpose.msra.mxu0 %v338
        %429 = vmatprep.subr.bf16.mxu0 0
        %430 = vmatpush1.bf16.xpose.msra.mxu0 %v337
        %431 = vmatprep.subr.bf16.mxu0 0
        %432 = vmatpush1.bf16.xpose.msra.mxu0 %v336
        %433 = vmatprep.subr.bf16.mxu0 0
        %434 = vmatpush1.bf16.xpose.msra.mxu0 %v335
        %435 = vmatprep.subr.bf16.mxu0 0
        %436 = vmatpush1.bf16.xpose.msra.mxu0 %v334
        %437 = vmatprep.subr.bf16.mxu0 0
        %438 = vmatpush1.bf16.xpose.msra.mxu0 %v333
        %439 = vmatprep.subr.bf16.mxu0 0
        %440 = vmatpush1.bf16.xpose.msra.mxu0 %v332
        %441 = vmatprep.subr.bf16.mxu0 0
        %442 = vmatpush1.bf16.xpose.msra.mxu0 %v331
        %443 = vmatprep.subr.bf16.mxu0 0
        %444 = vmatpush2.bf16.xpose.msra.mxu0 0
        %445 = vmatprep.subr.bf16.mxu0 0
        %446 = vmatpush2.bf16.xpose.msra.mxu0 0
        %447 = vmatprep.subr.bf16.mxu0 0
        %448 = vmatpush2.bf16.xpose.msra.mxu0 0
        %449 = vmatprep.subr.bf16.mxu0 0
        %450 = vmatpush2.bf16.xpose.msra.mxu0 0
        %451 = vmatprep.subr.bf16.mxu0 0
        %452 = vmatpush2.bf16.xpose.msra.mxu0 0
        %453 = vmatprep.subr.bf16.mxu0 0
        %454 = vmatpush2.bf16.xpose.msra.mxu0 0
        %455 = vmatprep.subr.bf16.mxu0 0
        %456 = vmatpush2.bf16.xpose.msra.mxu0 0
        %457 = vmatprep.subr.bf16.mxu0 0
        %458 = vmatpush2.bf16.xpose.msra.mxu0 0
        %459 = vmatprep.mubr.bf16.mxu0 0
        %460 = vmatmul.mubr.bf16.gmra.mxu0 %v310
        %v461 = vpop.f32.mrf.mxu0
        %v462 = vadd.f32 %v422, %v461
        %v463 = vpop.f32.mrf.mxu0
        %v464 = vpop.f32.mrf.mxu0
        %v465 = vpop.f32.mrf.mxu0
        %466 = vdwg.mxu0
        %v467 = vtanh.pop %v462
        %468 = vst [vmem:[%s305] sm:$0xff] %v467
        %s469 = sand.u32 %s146, 1
        %s470 = scalar_lea.sflag [#allocation4], %s469
        %s471 = sand.u32 %s146, 1
        %s472 = smul.addr %s471, 8
        %s473 = scalar_lea.vmem [#allocation9], %s472
        // Predicated region
        $region53: #{tpu_custom_call.1} parent=35 // pred_check
          %p474 = pneg %p156
        $region54: #{tpu_custom_call.1} parent=35 // pred_check_branch
          %476 = sbr.rel (%p474) target = $region56
        $region55: #{tpu_custom_call.1} parent=35 // pred_region
          %s478 = ssub.s32 128, 128
          %479 = vsyncadd %s470, %s478
          %s480 = smul.addr %s24, 2
          %s481 = sadd.s32 %s25, %s480
          %s482 = smul.addr %s481, 128
          %s483 = scalar_lea.hbm %s4, %s482
          %s485 = sshll.u32 %s473, 4
          %s486 = int_to_ptr.vmem [resolvable:$true] %s485
          %488 = dma.vmem_to_hbm [thread:$0]  %s486, 128, %s483, %s470
        $region56: #{tpu_custom_call.1} parent=35 // pred_fallthru
          _
      $region36: #{tpu_custom_call.1} parent=5 // pred_fallthru
        _
      %p489 = scmp.le.s32.totalorder 2, %s15
      // Predicated region
      $region57: #{tpu_custom_call.1} parent=5 // pred_check
        %p490 = pneg %p489
      $region58: #{tpu_custom_call.1} parent=5 // pred_check_branch
        %492 = sbr.rel (%p490) target = $region60
      $region59: #{tpu_custom_call.1} parent=5 // pred_region
        %s493 = ssub.s32 %s15, 2
        // Predicated region
        $region61: #{tpu_custom_call.1} parent=59 // pred_check
          %p494 = pneg %p162
        $region62: #{tpu_custom_call.1} parent=59 // pred_check_branch
          %496 = sbr.rel (%p494) target = $region64
        $region63: #{tpu_custom_call.1} parent=59 // pred_region
          %s497 = sand.u32 %s147, 1
          %s498 = scalar_lea.sflag [#allocation4], %s497
          %s499 = sand.u32 %s147, 1
          %s500 = smul.addr %s499, 8
          %s501 = scalar_lea.vmem [#allocation9], %s500
          %502 = dma.done %s498, 128
        $region64: #{tpu_custom_call.1} parent=59 // pred_fallthru
          _
      $region60: #{tpu_custom_call.1} parent=5 // pred_fallthru
        _
    $region6: #{tpu_custom_call.1} parent=1 // loop_footer
      %s19 = sadd.s32 1, %s15
    $region7: #{tpu_custom_call.1} parent=1 // loop_footer_branch
      %14 = sbr.rel target = $region3
    $region8: #{tpu_custom_call.1} parent=1 // loop_exit
      _
    %503 = vsyncpa [#allocation3], 1
    %s504 = scalar_lea.sflag [#allocation3], 1
    %505 = vsyncpa %s504, 1
    %506 = vsyncpa [#allocation6], 1
    %507 = vsyncpa [#allocation4], 1
    %s508 = scalar_lea.sflag [#allocation4], 1
    %509 = vsyncpa %s508, 1

</llo_original>
